<compile_context>
chip_gen: v7x
topology: tpu7x:2x2x1
jax: 0.10.0
libtpu: 0.0.40
codegen_flags: <defaults>
</compile_context>

<pallas_src>
import jax
import jax.numpy as jnp
import numpy as np
from jax.experimental import pallas as pl
from jax.experimental.pallas import tpu as pltpu


def _scale_rows_kernel(x_ref, s_ref, o_ref):
    # x_ref: (rb, cb), s_ref: (rb, 1) — lane-broadcast multiply, one VPU op.
    o_ref[...] = x_ref[...] * s_ref[...]


def _sublane_multiple(dtype):
    # Sub-32-bit dtypes pack along sublanes: 8 for 32-bit, 16 for 16-bit, 32 for 8-bit.
    bits = jnp.dtype(dtype).itemsize * 8
    return max(8, 256 // bits)


def _tpu_budget():
    """(per-tile byte budget, vmem_limit_bytes or None) for the current chip."""
    kind = ""
    try:
        kind = jax.devices()[0].device_kind.lower()
    except Exception:
        pass
    if "v7" in kind:
        # 3.2 TB/s HBM: bigger tiles amortize the ~0.35 µs per-step overhead.
        # 2 bufs × (in + out) × 6 MiB ≈ 24 MiB << 48 MiB scoped (64 MiB phys).
        return 6 << 20, 48 << 20
    # v5e/v6e: 2 MiB tiles already sit near the HBM roofline plateau and fit
    # comfortably in the 16/32 MiB scoped-VMEM defaults.
    return 2 << 20, None


def _tile_plan(rows, hw, itemsize, target_bytes, sub):
    """Pick (rb, cb) with rb*cb*itemsize <= target_bytes.
    rb is a multiple of the sublane count (or the full row extent);
    cb is a multiple of 128 lanes (or the full lane extent)."""
    row_bytes = hw * itemsize
    if sub * row_bytes <= target_bytes:
        # Whole rows fit in the budget: tile rows only.
        rb = (target_bytes // row_bytes) // sub * sub
        rb = min(rows, max(sub, rb))
        cb = hw
    else:
        # Very large H*W: thin row block + lane tiling (multiple of 128).
        rb = sub
        cb = (target_bytes // (rb * itemsize)) // 128 * 128
        cb = min(hw, max(128, cb))
    if rows <= sub:
        rb = rows  # full row extent — always a legal block shape
    return rb, cb


def dropout2d_chain(x, key):
    """Forward pass of the PyTorch Model (train=True dropout2d chain, p=0.5)."""
    N, C, H, W = x.shape
    rows, hw = N * C, H * W

    # Per-(n, c)-plane keep masks for the two dropout2d calls.
    k1, k2 = jax.random.split(key)
    m1 = jax.random.bernoulli(k1, 0.5, (rows,)).astype(jnp.float32)
    m2 = jax.random.bernoulli(k2, 0.5, (rows,)).astype(jnp.float32)
    # dropout2d -> x*2*m1 ; +x -> x*(2*m1+1) ; dropout2d -> *2*m2.
    scale = ((2.0 * m1 + 1.0) * (2.0 * m2)).astype(x.dtype).reshape(rows, 1)

    itemsize = jnp.dtype(x.dtype).itemsize
    sub = _sublane_multiple(x.dtype)
    target_bytes, vmem_limit = _tpu_budget()

    x2d = x.reshape(rows, hw)

    # Lane-dense output: pad H*W up to a multiple of 128 if ragged.
    hw_pad = hw
    if hw % 128 != 0:
        hw_pad = ((hw + 127) // 128) * 128
        x2d = jnp.pad(x2d, ((0, 0), (0, hw_pad - hw)))

    rb, cb = _tile_plan(rows, hw_pad, itemsize, target_bytes, sub)
    grid = (pl.cdiv(rows, rb), pl.cdiv(hw_pad, cb))

    out2d = pl.pallas_call(
        _scale_rows_kernel,
        out_shape=jax.ShapeDtypeStruct((rows, hw_pad), x.dtype),
        grid=grid,
        in_specs=[
            pl.BlockSpec((rb, cb), lambda i, j: (i, j)),
            pl.BlockSpec((rb, 1), lambda i, j: (i, 0)),
        ],
        out_specs=pl.BlockSpec((rb, cb), lambda i, j: (i, j)),
        compiler_params=pltpu.CompilerParams(
            dimension_semantics=("parallel", "parallel"),
            vmem_limit_bytes=vmem_limit,
        ),
    )(x2d, scale)

    if hw_pad != hw:
        out2d = out2d[:, :hw]
    return out2d.reshape(N, C, H, W)


if __name__ == "__main__":
    key = jax.random.PRNGKey(0)
    kx, kd = jax.random.split(key)

    # Small NCHW input consistent with the module's forward.
    x = jax.random.normal(kx, (2, 4, 16, 16), dtype=jnp.float32)

    out = dropout2d_chain(x, kd)
    out = jax.block_until_ready(out)

    assert out.shape == x.shape and out.dtype == x.dtype

    # Sanity: dropout2d acts per-(n,c) plane, so each plane of `out` must be
    # x scaled by a single factor in {0, 2, 6}.
    rows, hw = 2 * 4, 16 * 16
    xf = np.asarray(x).reshape(rows, hw)
    of = np.asarray(out).reshape(rows, hw)
    for r in range(rows):
        mask = np.abs(xf[r]) > 1e-6
        if not mask.any():
            continue
        ratio = of[r][mask] / xf[r][mask]
        val = float(ratio[0])
        assert float(np.max(np.abs(ratio - val))) < 1e-3, "per-channel scaling violated"
        assert min(abs(val - t) for t in (0.0, 2.0, 6.0)) < 1e-3, "scale not in {0,2,6}"

    print("KERNEL_OK")
</pallas_src>

<mosaic_0001>
module attributes {stable_mosaic.version = 11 : i64} {
  func.func @_scale_rows_kernel(%arg0: i32, %arg1: i32, %arg2: memref<8x256xf32, #tpu.memory_space<vmem>>, %arg3: memref<8x1xf32, #tpu.memory_space<vmem>>, %arg4: memref<8x256xf32, #tpu.memory_space<vmem>>) attributes {dimension_semantics = [#tpu.dimension_semantics<parallel>, #tpu.dimension_semantics<parallel>], iteration_bounds = array<i64: 1, 1>, scalar_prefetch = 0 : i64, scratch_operands = 0 : i64, tpu.core_type = #tpu.core_type<tc>, window_params = [{transform_indices = @transform_0, window_bounds = array<i64: 8, 256>}, {transform_indices = @transform_1, window_bounds = array<i64: 8, 1>}, {transform_indices = @transform_2, window_bounds = array<i64: 8, 256>}]} {
    %c0 = arith.constant 0 : index
    %c0_0 = arith.constant 0 : index
    %0 = vector.load %arg2[%c0, %c0_0] : memref<8x256xf32, #tpu.memory_space<vmem>>, vector<8x256xf32>
    %c0_1 = arith.constant 0 : index
    %c0_2 = arith.constant 0 : index
    %1 = vector.load %arg3[%c0_1, %c0_2] : memref<8x1xf32, #tpu.memory_space<vmem>>, vector<8x1xf32>
    %2 = vector.broadcast %1 : vector<8x1xf32> to vector<8x256xf32>
    %3 = arith.mulf %0, %2 : vector<8x256xf32>
    %c0_3 = arith.constant 0 : index
    %c0_4 = arith.constant 0 : index
    %4 = vector.load %arg4[%c0_3, %c0_4] : memref<8x256xf32, #tpu.memory_space<vmem>>, vector<8x256xf32>
    tpu.vector_store %arg4[%c0_3, %c0_4], %3 {strides = array<i32>} : memref<8x256xf32, #tpu.memory_space<vmem>>, vector<8x256xf32>,
    return
  }
  func.func @transform_0(%arg0: i32, %arg1: i32) -> (i32, i32) {
    %c0_i32 = arith.constant 0 : i32
    return %arg0, %arg1 : i32, i32
  }
  func.func @transform_1(%arg0: i32, %arg1: i32) -> (i32, i32) {
    %c0_i32 = arith.constant 0 : i32
    %c0_i32_0 = arith.constant 0 : i32
    return %arg0, %c0_i32 : i32, i32
  }
  func.func @transform_2(%arg0: i32, %arg1: i32) -> (i32, i32) {
    %c0_i32 = arith.constant 0 : i32
    return %arg0, %arg1 : i32, i32
  }
}

</mosaic_0001>

<llo_original>
// kernel: tpu_custom_call.1
$region0: #{tpu_custom_call.1}
  #allocation0 [shape = 'u32[]', space=smem, size = 0x4, offset = 0x4, fixed_abs, tag = 'smem constant byte address 0x4 - core index']
  #allocation1 [shape = 'u32[144,128]{1,0:T(1,128)}', space=vmem, size = 0x12000, scoped, tag = 'internal scratch']
  %s0 = inlined_call_operand.hbm [shape: f32[8,256], index: 0, kind: input, shape index: {}]
  %s1 = inlined_call_operand.vmem [shape: f32[8,1], index: 1, kind: input, shape index: {}]
  %s2 = inlined_call_operand.hbm [shape: f32[8,256], index: 2, kind: output, shape index: {}]
  %s3 = sld [smem:[#allocation0]]
  $region22: #{tpu_custom_call.1} parent=0
    _
  %s5 = ssub.s32 1, %s3
  %s6 = scalar_select 0, %s5, %s3
  $region1: #{tpu_custom_call.1} parent=0
    #allocation2 [shape = 'u8[8192]{0}', space=vmem, size = 0x2000, scoped, tag = 'input window, operand 0, single buffered']
    #allocation3 [shape = 's32[1]{0}', space=sflag, size = 0x4, scoped, tag = 'scoped memory for tpu_custom_call.1']
    #allocation4 [shape = 's32[1]{0}', space=sflag, size = 0x4, scoped, tag = 'scoped memory for tpu_custom_call.1']
    #allocation5 [shape = 'u8[8192]{0}', space=vmem, size = 0x2000, scoped, tag = 'output window, operand 0, single buffered']
    %7 = vsyncpa [#allocation3], 0
    %8 = vsyncpa [#allocation4], 0
    // Predicated region
    $region2: #{tpu_custom_call.1} parent=1 // pred_check
      _
    $region3: #{tpu_custom_call.1} parent=1 // pred_check_branch
      %10 = sbr.rel (0) target = $region5
    $region4: #{tpu_custom_call.1} parent=1 // pred_region
      %s12 = ssub.s32 256, 256
      %13 = vsyncadd [#allocation3], %s12
      %s15 = sshll.u32 [#allocation2], 4
      %s16 = int_to_ptr.vmem [resolvable:$true] %s15
      %18 = dma.hbm_to_vmem [thread:$0]  %s0, 256, %s16, [#allocation3]
    $region5: #{tpu_custom_call.1} parent=1 // pred_fallthru
      _
    // Predicated region
    $region6: #{tpu_custom_call.1} parent=1 // pred_check
      _
    $region7: #{tpu_custom_call.1} parent=1 // pred_check_branch
      %20 = sbr.rel (0) target = $region9
    $region8: #{tpu_custom_call.1} parent=1 // pred_region
      _
    $region9: #{tpu_custom_call.1} parent=1 // pred_fallthru
      _
    // Predicated region
    $region10: #{tpu_custom_call.1} parent=1 // pred_check
      _
    $region11: #{tpu_custom_call.1} parent=1 // pred_check_branch
      %22 = sbr.rel (0) target = $region13
    $region12: #{tpu_custom_call.1} parent=1 // pred_region
      %23 = dma.done [#allocation3], 256
    $region13: #{tpu_custom_call.1} parent=1 // pred_fallthru
      _
    %v24 = vld [vmem:[#allocation2] sm:$0xff]
    %v25 = vld [vmem:[#allocation2 + $0x8] sm:$0xff]
    %v26 = vld [vmem:[%s1] sm:$0xff]
    %28 = vset.pattern.permute.xlu0 0
    %29 = vperm.xlu0 %28, %v26
    %v30 = vpop.permute.xlu0 %29
    %v32 = vmul.f32 %v24, %v30
    %v33 = vmul.f32 %v25, %v30
    %34 = vst [vmem:[#allocation5] sm:$0xff] %v32
    %35 = vst [vmem:[#allocation5 + $0x8] sm:$0xff] %v33
    // Predicated region
    $region14: #{tpu_custom_call.1} parent=1 // pred_check
      _
    $region15: #{tpu_custom_call.1} parent=1 // pred_check_branch
      %37 = sbr.rel (0) target = $region17
    $region16: #{tpu_custom_call.1} parent=1 // pred_region
      %s39 = ssub.s32 256, 256
      %40 = vsyncadd [#allocation4], %s39
      %s42 = sshll.u32 [#allocation5], 4
      %s43 = int_to_ptr.vmem [resolvable:$true] %s42
      %45 = dma.vmem_to_hbm [thread:$0]  %s43, 256, %s2, [#allocation4]
    $region17: #{tpu_custom_call.1} parent=1 // pred_fallthru
      _
    // Predicated region
    $region18: #{tpu_custom_call.1} parent=1 // pred_check
      _
    $region19: #{tpu_custom_call.1} parent=1 // pred_check_branch
      %47 = sbr.rel (0) target = $region21
    $region20: #{tpu_custom_call.1} parent=1 // pred_region
      %48 = dma.done [#allocation4], 256
    $region21: #{tpu_custom_call.1} parent=1 // pred_fallthru
      _
    %49 = vsyncpa [#allocation3], 1
    %50 = vsyncpa [#allocation4], 1

</llo_original>
